<compile_context>
chip_gen: v6e
topology: v6e:2x2x1
jax: 0.10.0
libtpu: 0.0.40
codegen_flags: <defaults>
</compile_context>

<pallas_src>
import functools

import jax
import jax.numpy as jnp
from jax.experimental import pallas as pl
from jax.experimental.pallas import tpu as pltpu


def _round_up(x, m):
    return ((x + m - 1) // m) * m


def _ffn_kernel(x_ref, w1_ref, b1_ref, w2_ref, b2_ref, g_ref, beta_ref,
                o_ref, acc_ref):
    """Grid = (row_tiles, f_tiles).  f axis is a reduction into acc_ref."""
    j = pl.program_id(1)
    nf = pl.num_programs(1)

    @pl.when(j == 0)
    def _():
        acc_ref[...] = jnp.zeros_like(acc_ref)

    # linear1 (this F-slice) + relu, f32 accumulation on the MXU.
    x = x_ref[...]  # native dtype (bf16/f32) straight into the MXU
    h = jnp.dot(x, w1_ref[...], preferred_element_type=jnp.float32)
    h = jnp.maximum(h + b1_ref[...].astype(jnp.float32), 0.0)

    # linear2 partial product for this F-slice, accumulated in f32 scratch.
    acc_ref[...] += jnp.dot(h.astype(w2_ref.dtype), w2_ref[...],
                            preferred_element_type=jnp.float32)

    @pl.when(j == nf - 1)
    def _():
        d = x_ref.shape[-1]
        r = (x_ref[...].astype(jnp.float32) + acc_ref[...]
             + b2_ref[...].astype(jnp.float32))        # residual add
        # One-pass LayerNorm stats: var = E[r^2] - mean^2.
        s1 = jnp.sum(r, axis=-1, keepdims=True)
        s2 = jnp.sum(r * r, axis=-1, keepdims=True)
        mean = s1 * (1.0 / d)
        var = jnp.maximum(s2 * (1.0 / d) - mean * mean, 0.0)
        rnorm = (r - mean) * jax.lax.rsqrt(var + 1e-5)
        o_ref[...] = (rnorm * g_ref[...].astype(jnp.float32)
                      + beta_ref[...].astype(jnp.float32)).astype(o_ref.dtype)


@functools.partial(jax.jit, static_argnames=("row_tile", "f_tile"))
def ffn_layer(tgt, w1, b1, w2, b2, gamma, beta, *, row_tile=None, f_tile=None):
    """tgt: (seq, batch, d_model).  Returns same shape/dtype as tgt."""
    S, B, D = tgt.shape
    F = w1.shape[1]
    rows = S * B
    x2d = tgt.reshape(rows, D)

    # sublane granularity depends on dtype (8 for f32, 16 for bf16, ...)
    sub = max(8, 32 // tgt.dtype.itemsize)

    if row_tile is None:
        row_tile = min(256, _round_up(max(rows, sub), sub))
    row_tile = _round_up(row_tile, sub)
    if f_tile is None:
        f_tile = min(512, _round_up(F, 128))
    f_tile = _round_up(f_tile, 128)

    rows_p = _round_up(rows, row_tile)
    F_p = _round_up(F, f_tile)

    # Zero-pad rows / F so grid divides evenly (padding contributes 0 to dots).
    if rows_p != rows:
        x2d = jnp.pad(x2d, ((0, rows_p - rows), (0, 0)))
    if F_p != F:
        w1 = jnp.pad(w1, ((0, 0), (0, F_p - F)))
        b1 = jnp.pad(b1, ((0, F_p - F),))
        w2 = jnp.pad(w2, ((0, F_p - F), (0, 0)))

    # biases / affine params as 2-D (1, N) so they broadcast cleanly in VMEM
    b1_2d = b1.reshape(1, F_p)
    b2_2d = b2.reshape(1, D)
    g_2d = gamma.reshape(1, D)
    be_2d = beta.reshape(1, D)

    grid = (rows_p // row_tile, F_p // f_tile)

    # Explicit VMEM budget: double-buffered x/out/W1/W2/b1 blocks, constant
    # small params, acc scratch, plus the (row_tile, f_tile) f32 h intermediate.
    itm_x = tgt.dtype.itemsize
    itm_w = w1.dtype.itemsize
    vmem_bytes = (
        2 * row_tile * D * itm_x            # x tiles (double-buffered)
        + 2 * row_tile * D * itm_x          # out tiles
        + 2 * (D * f_tile + f_tile * D) * itm_w   # W1 + W2 blocks
        + 2 * (f_tile + 3 * D) * 4          # b1 / b2 / gamma / beta
        + row_tile * D * 4                  # f32 accumulator scratch
        + 2 * row_tile * f_tile * 4         # h intermediate + headroom
    )
    vmem_limit = int(min(max(2 * vmem_bytes, 4 << 20), 60 << 20))

    cost = pl.CostEstimate(
        flops=4 * rows_p * D * F_p,                 # two matmuls
        transcendentals=rows_p,                     # rsqrt per row
        bytes_accessed=(x2d.size * itm_x + rows_p * D * itm_x
                        + w1.size * itm_w + w2.size * itm_w
                        + (F_p + 3 * D) * 4),
    )

    out2d = pl.pallas_call(
        _ffn_kernel,
        out_shape=jax.ShapeDtypeStruct((rows_p, D), tgt.dtype),
        grid_spec=pltpu.PrefetchScalarGridSpec(
            num_scalar_prefetch=0,
            grid=grid,
            in_specs=[
                pl.BlockSpec((row_tile, D), lambda i, j: (i, 0)),  # x tile
                pl.BlockSpec((D, f_tile), lambda i, j: (0, j)),    # W1 slice
                pl.BlockSpec((1, f_tile), lambda i, j: (0, j)),    # b1 slice
                pl.BlockSpec((f_tile, D), lambda i, j: (j, 0)),    # W2 slice
                pl.BlockSpec((1, D), lambda i, j: (0, 0)),         # b2
                pl.BlockSpec((1, D), lambda i, j: (0, 0)),         # gamma
                pl.BlockSpec((1, D), lambda i, j: (0, 0)),         # beta
            ],
            out_specs=pl.BlockSpec((row_tile, D), lambda i, j: (i, 0)),
            scratch_shapes=[pltpu.VMEM((row_tile, D), jnp.float32)],
        ),
        compiler_params=pltpu.CompilerParams(
            dimension_semantics=("parallel", "arbitrary"),
            vmem_limit_bytes=vmem_limit,
        ),
        cost_estimate=cost,
    )(x2d, w1, b1_2d, w2, b2_2d, g_2d, be_2d)

    if rows_p != rows:
        out2d = out2d[:rows]
    return out2d.reshape(S, B, D)


def _xavier_uniform(key, fan_in, fan_out, dtype=jnp.float32):
    # matches torch.nn.init.xavier_uniform_ (gain=1)
    limit = (6.0 / (fan_in + fan_out)) ** 0.5
    return jax.random.uniform(key, (fan_in, fan_out), dtype, -limit, limit)


def _ffn_reference(tgt, w1, b1, w2, b2, gamma, beta):
    h = jnp.maximum(tgt @ w1 + b1, 0.0)
    y = h @ w2 + b2
    r = tgt + y
    mean = jnp.mean(r, axis=-1, keepdims=True)
    var = jnp.mean((r - mean) ** 2, axis=-1, keepdims=True)
    return (r - mean) / jnp.sqrt(var + 1e-5) * gamma + beta


if __name__ == "__main__":
    # Small shapes consistent with FFNLayer(d_model=128, dim_feedforward=256).
    # rows = 64 / row_tile = 16 -> 4 row tiles;  F = 256 / f_tile = 128 -> 2
    # reduction steps: multi-step grid exercises pipelining + the accumulator.
    seq, batch, d_model, dim_ff = 16, 4, 128, 256

    key = jax.random.PRNGKey(0)
    k_x, k_w1, k_w2, k_b1, k_b2 = jax.random.split(key, 5)

    tgt = jax.random.normal(k_x, (seq, batch, d_model), jnp.float32)

    # PyTorch Linear stores weight (out, in); we keep (in, out) and do x @ W.
    w1 = _xavier_uniform(k_w1, d_model, dim_ff)
    b1 = jax.random.uniform(k_b1, (dim_ff,), jnp.float32, -0.05, 0.05)
    w2 = _xavier_uniform(k_w2, dim_ff, d_model)
    b2 = jax.random.uniform(k_b2, (d_model,), jnp.float32, -0.05, 0.05)
    gamma = jnp.ones((d_model,), jnp.float32)
    beta = jnp.zeros((d_model,), jnp.float32)

    out = ffn_layer(tgt, w1, b1, w2, b2, gamma, beta, row_tile=16, f_tile=128)
    out = jax.block_until_ready(out)
    ref = _ffn_reference(tgt, w1, b1, w2, b2, gamma, beta)
    assert out.shape == tgt.shape and out.dtype == tgt.dtype
    assert jnp.allclose(out, ref, atol=1e-4, rtol=1e-4)

    # Second config with non-divisible rows / F to exercise the padding path.
    seq2, batch2, d_model2, dim_ff2 = 7, 3, 96, 200
    k2 = jax.random.PRNGKey(1)
    k_x2, k_w1b, k_w2b = jax.random.split(k2, 3)
    tgt2 = jax.random.normal(k_x2, (seq2, batch2, d_model2), jnp.float32)
    w1b = _xavier_uniform(k_w1b, d_model2, dim_ff2)
    b1b = jnp.zeros((dim_ff2,), jnp.float32)
    w2b = _xavier_uniform(k_w2b, dim_ff2, d_model2)
    b2b = jnp.zeros((d_model2,), jnp.float32)
    gb = jnp.ones((d_model2,), jnp.float32)
    bb = jnp.zeros((d_model2,), jnp.float32)

    out2 = ffn_layer(tgt2, w1b, b1b, w2b, b2b, gb, bb, row_tile=16, f_tile=128)
    out2 = jax.block_until_ready(out2)
    ref2 = _ffn_reference(tgt2, w1b, b1b, w2b, b2b, gb, bb)
    assert out2.shape == tgt2.shape and out2.dtype == tgt2.dtype
    assert jnp.allclose(out2, ref2, atol=1e-4, rtol=1e-4)

    # TODO(synk): normalize_before=True (forward_pre) branch not implemented;
    # the module default (False / forward_post) is what this kernel fuses.
    print("KERNEL_OK")
</pallas_src>

<mosaic_0001>
module attributes {stable_mosaic.version = 11 : i64} {
  func.func @_ffn_kernel(%arg0: i32, %arg1: i32, %arg2: memref<16x128xf32, #tpu.memory_space<vmem>>, %arg3: memref<128x128xf32, #tpu.memory_space<vmem>>, %arg4: memref<1x128xf32, #tpu.memory_space<vmem>>, %arg5: memref<128x128xf32, #tpu.memory_space<vmem>>, %arg6: memref<1x128xf32, #tpu.memory_space<vmem>>, %arg7: memref<1x128xf32, #tpu.memory_space<vmem>>, %arg8: memref<1x128xf32, #tpu.memory_space<vmem>>, %arg9: memref<16x128xf32, #tpu.memory_space<vmem>>, %arg10: memref<16x128xf32, #tpu.memory_space<vmem>>) attributes {dimension_semantics = [#tpu.dimension_semantics<parallel>, #tpu.dimension_semantics<arbitrary>], iteration_bounds = array<i64: 4, 2>, scalar_prefetch = 0 : i64, scratch_operands = 1 : i64, tpu.core_type = #tpu.core_type<tc>, window_params = [{transform_indices = @transform_0, window_bounds = array<i64: 16, 128>}, {transform_indices = @transform_1, window_bounds = array<i64: 128, 128>}, {transform_indices = @transform_2, window_bounds = array<i64: 1, 128>}, {transform_indices = @transform_3, window_bounds = array<i64: 128, 128>}, {pipeline_mode = #tpu.pipeline_mode<synchronous>, transform_indices = @transform_4, window_bounds = array<i64: 1, 128>}, {pipeline_mode = #tpu.pipeline_mode<synchronous>, transform_indices = @transform_5, window_bounds = array<i64: 1, 128>}, {pipeline_mode = #tpu.pipeline_mode<synchronous>, transform_indices = @transform_6, window_bounds = array<i64: 1, 128>}, {transform_indices = @transform_7, window_bounds = array<i64: 16, 128>}]} {
    %c0_i32 = arith.constant 0 : i32
    %0 = arith.cmpi eq, %arg1, %c0_i32 : i32
    %1 = arith.extui %0 : i1 to i32
    %c0_i32_0 = arith.constant 0 : i32
    %2 = arith.cmpi ne, %1, %c0_i32_0 : i32
    scf.if %2 {
      %cst_15 = arith.constant 0.000000e+00 : f32
      %19 = vector.broadcast %cst_15 : f32 to vector<16x128xf32>
      %c0_16 = arith.constant 0 : index
      %c0_17 = arith.constant 0 : index
      %20 = vector.load %arg10[%c0_16, %c0_17] : memref<16x128xf32, #tpu.memory_space<vmem>>, vector<16x128xf32>
      tpu.vector_store %arg10[%c0_16, %c0_17], %19 {strides = array<i32>} : memref<16x128xf32, #tpu.memory_space<vmem>>, vector<16x128xf32>,
    } else {
    }
    %c0 = arith.constant 0 : index
    %c0_1 = arith.constant 0 : index
    %3 = vector.load %arg2[%c0, %c0_1] : memref<16x128xf32, #tpu.memory_space<vmem>>, vector<16x128xf32>
    %c0_2 = arith.constant 0 : index
    %c0_3 = arith.constant 0 : index
    %4 = vector.load %arg3[%c0_2, %c0_3] : memref<128x128xf32, #tpu.memory_space<vmem>>, vector<128x128xf32>
    %cst = arith.constant dense<0.000000e+00> : vector<16x128xf32>
    %5 = tpu.matmul %3, %4, %cst {dimension_numbers = #tpu.dot_dimension_numbers<[1], [0], [0], [1], [0, 0, 1, 1], [], []>} : vector<16x128xf32>, vector<128x128xf32>, vector<16x128xf32> -> vector<16x128xf32>
    %c0_4 = arith.constant 0 : index
    %c0_5 = arith.constant 0 : index
    %6 = vector.load %arg4[%c0_4, %c0_5] : memref<1x128xf32, #tpu.memory_space<vmem>>, vector<1x128xf32>
    %7 = vector.broadcast %6 : vector<1x128xf32> to vector<16x128xf32>
    %8 = arith.addf %5, %7 : vector<16x128xf32>
    %cst_6 = arith.constant 0.000000e+00 : f32
    %9 = vector.broadcast %cst_6 : f32 to vector<16x128xf32>
    %10 = arith.maximumf %8, %9 : vector<16x128xf32>
    %c0_7 = arith.constant 0 : index
    %c0_8 = arith.constant 0 : index
    %11 = vector.load %arg10[%c0_7, %c0_8] : memref<16x128xf32, #tpu.memory_space<vmem>>, vector<16x128xf32>
    %c0_9 = arith.constant 0 : index
    %c0_10 = arith.constant 0 : index
    %12 = vector.load %arg5[%c0_9, %c0_10] : memref<128x128xf32, #tpu.memory_space<vmem>>, vector<128x128xf32>
    %cst_11 = arith.constant dense<0.000000e+00> : vector<16x128xf32>
    %13 = tpu.matmul %10, %12, %cst_11 {dimension_numbers = #tpu.dot_dimension_numbers<[1], [0], [0], [1], [0, 0, 1, 1], [], []>} : vector<16x128xf32>, vector<128x128xf32>, vector<16x128xf32> -> vector<16x128xf32>
    %14 = arith.addf %11, %13 : vector<16x128xf32>
    %c0_12 = arith.constant 0 : index
    %c0_13 = arith.constant 0 : index
    %15 = vector.load %arg10[%c0_12, %c0_13] : memref<16x128xf32, #tpu.memory_space<vmem>>, vector<16x128xf32>
    tpu.vector_store %arg10[%c0_12, %c0_13], %14 {strides = array<i32>} : memref<16x128xf32, #tpu.memory_space<vmem>>, vector<16x128xf32>,
    %c1_i32 = arith.constant 1 : i32
    %16 = arith.cmpi eq, %arg1, %c1_i32 : i32
    %17 = arith.extui %16 : i1 to i32
    %c0_i32_14 = arith.constant 0 : i32
    %18 = arith.cmpi ne, %17, %c0_i32_14 : i32
    scf.if %18 {
      %c0_15 = arith.constant 0 : index
      %c0_16 = arith.constant 0 : index
      %19 = vector.load %arg2[%c0_15, %c0_16] : memref<16x128xf32, #tpu.memory_space<vmem>>, vector<16x128xf32>
      %c0_17 = arith.constant 0 : index
      %c0_18 = arith.constant 0 : index
      %20 = vector.load %arg10[%c0_17, %c0_18] : memref<16x128xf32, #tpu.memory_space<vmem>>, vector<16x128xf32>
      %21 = arith.addf %19, %20 : vector<16x128xf32>
      %c0_19 = arith.constant 0 : index
      %c0_20 = arith.constant 0 : index
      %22 = vector.load %arg6[%c0_19, %c0_20] : memref<1x128xf32, #tpu.memory_space<vmem>>, vector<1x128xf32>
      %23 = vector.broadcast %22 : vector<1x128xf32> to vector<16x128xf32>
      %24 = arith.addf %21, %23 : vector<16x128xf32>
      %cst_21 = arith.constant dense<0.000000e+00> : vector<16xf32>
      %25 = vector.multi_reduction <add>, %24, %cst_21 [1] : vector<16x128xf32> to vector<16xf32>
      %26 = vector.shape_cast %25 : vector<16xf32> to vector<16x1xf32>
      %27 = arith.mulf %24, %24 : vector<16x128xf32>
      %cst_22 = arith.constant dense<0.000000e+00> : vector<16xf32>
      %28 = vector.multi_reduction <add>, %27, %cst_22 [1] : vector<16x128xf32> to vector<16xf32>
      %29 = vector.shape_cast %28 : vector<16xf32> to vector<16x1xf32>
      %cst_23 = arith.constant 7.812500e-03 : f32
      %30 = vector.broadcast %cst_23 : f32 to vector<16x1xf32>
      %31 = arith.mulf %26, %30 : vector<16x1xf32>
      %cst_24 = arith.constant 7.812500e-03 : f32
      %32 = vector.broadcast %cst_24 : f32 to vector<16x1xf32>
      %33 = arith.mulf %29, %32 : vector<16x1xf32>
      %34 = arith.mulf %31, %31 : vector<16x1xf32>
      %35 = arith.subf %33, %34 : vector<16x1xf32>
      %cst_25 = arith.constant 0.000000e+00 : f32
      %36 = vector.broadcast %cst_25 : f32 to vector<16x1xf32>
      %37 = arith.maximumf %35, %36 : vector<16x1xf32>
      %38 = vector.broadcast %31 : vector<16x1xf32> to vector<16x128xf32>
      %39 = arith.subf %24, %38 : vector<16x128xf32>
      %cst_26 = arith.constant 9.99999974E-6 : f32
      %40 = vector.broadcast %cst_26 : f32 to vector<16x1xf32>
      %41 = arith.addf %37, %40 : vector<16x1xf32>
      %42 = math.rsqrt %41 : vector<16x1xf32>
      %43 = vector.broadcast %42 : vector<16x1xf32> to vector<16x128xf32>
      %44 = arith.mulf %39, %43 : vector<16x128xf32>
      %c0_27 = arith.constant 0 : index
      %c0_28 = arith.constant 0 : index
      %45 = vector.load %arg7[%c0_27, %c0_28] : memref<1x128xf32, #tpu.memory_space<vmem>>, vector<1x128xf32>
      %46 = vector.broadcast %45 : vector<1x128xf32> to vector<16x128xf32>
      %47 = arith.mulf %44, %46 : vector<16x128xf32>
      %c0_29 = arith.constant 0 : index
      %c0_30 = arith.constant 0 : index
      %48 = vector.load %arg8[%c0_29, %c0_30] : memref<1x128xf32, #tpu.memory_space<vmem>>, vector<1x128xf32>
      %49 = vector.broadcast %48 : vector<1x128xf32> to vector<16x128xf32>
      %50 = arith.addf %47, %49 : vector<16x128xf32>
      %c0_31 = arith.constant 0 : index
      %c0_32 = arith.constant 0 : index
      %51 = vector.load %arg9[%c0_31, %c0_32] : memref<16x128xf32, #tpu.memory_space<vmem>>, vector<16x128xf32>
      tpu.vector_store %arg9[%c0_31, %c0_32], %50 {strides = array<i32>} : memref<16x128xf32, #tpu.memory_space<vmem>>, vector<16x128xf32>,
    } else {
    }
    return
  }
  func.func @transform_0(%arg0: i32, %arg1: i32) -> (i32, i32) {
    %c0_i32 = arith.constant 0 : i32
    %c0_i32_0 = arith.constant 0 : i32
    return %arg0, %c0_i32 : i32, i32
  }
  func.func @transform_1(%arg0: i32, %arg1: i32) -> (i32, i32) {
    %c0_i32 = arith.constant 0 : i32
    %c0_i32_0 = arith.constant 0 : i32
    return %c0_i32, %arg1 : i32, i32
  }
  func.func @transform_2(%arg0: i32, %arg1: i32) -> (i32, i32) {
    %c0_i32 = arith.constant 0 : i32
    %c0_i32_0 = arith.constant 0 : i32
    return %c0_i32, %arg1 : i32, i32
  }
  func.func @transform_3(%arg0: i32, %arg1: i32) -> (i32, i32) {
    %c0_i32 = arith.constant 0 : i32
    %c0_i32_0 = arith.constant 0 : i32
    return %arg1, %c0_i32 : i32, i32
  }
  func.func @transform_4(%arg0: i32, %arg1: i32) -> (i32, i32) {
    %c0_i32 = arith.constant 0 : i32
    %c0_i32_0 = arith.constant 0 : i32
    %c0_i32_1 = arith.constant 0 : i32
    return %c0_i32, %c0_i32_0 : i32, i32
  }
  func.func @transform_5(%arg0: i32, %arg1: i32) -> (i32, i32) {
    %c0_i32 = arith.constant 0 : i32
    %c0_i32_0 = arith.constant 0 : i32
    %c0_i32_1 = arith.constant 0 : i32
    return %c0_i32, %c0_i32_0 : i32, i32
  }
  func.func @transform_6(%arg0: i32, %arg1: i32) -> (i32, i32) {
    %c0_i32 = arith.constant 0 : i32
    %c0_i32_0 = arith.constant 0 : i32
    %c0_i32_1 = arith.constant 0 : i32
    return %c0_i32, %c0_i32_0 : i32, i32
  }
  func.func @transform_7(%arg0: i32, %arg1: i32) -> (i32, i32) {
    %c0_i32 = arith.constant 0 : i32
    %c0_i32_0 = arith.constant 0 : i32
    return %arg0, %c0_i32 : i32, i32
  }
}

</mosaic_0001>

<llo_original>
// kernel: ffn_layer.1
$region0: #{ffn_layer.1}
  #allocation0 [shape = 'u32[]', space=smem, size = 0x4, offset = 0x4, fixed_abs, tag = 'smem constant byte address 0x4 - core index']
  #allocation1 [shape = 'u32[144,128]{1,0:T(1,128)}', space=vmem, size = 0x12000, scoped, tag = 'internal scratch']
  #allocation2 [shape = 'f32[16,128]{1,0:T(8,128)}', space=vmem, size = 0x2000, scoped, tag = 'scratch operand']
  %s0 = inlined_call_operand.hbm [shape: f32[64,128], index: 0, kind: input, shape index: {}]
  %s1 = inlined_call_operand.hbm [shape: f32[128,256], index: 1, kind: input, shape index: {}]
  %s2 = inlined_call_operand.vmem [shape: f32[1,256], index: 2, kind: input, shape index: {}]
  %s3 = inlined_call_operand.hbm [shape: f32[256,128], index: 3, kind: input, shape index: {}]
  %s4 = inlined_call_operand.vmem [shape: f32[1,128], index: 4, kind: input, shape index: {}]
  %s5 = inlined_call_operand.vmem [shape: f32[1,128], index: 5, kind: input, shape index: {}]
  %s6 = inlined_call_operand.vmem [shape: f32[1,128], index: 6, kind: input, shape index: {}]
  %s7 = inlined_call_operand.hbm [shape: f32[64,128], index: 7, kind: output, shape index: {}]
  %s8 = sld [smem:[#allocation0]]
  $region81: #{ffn_layer.1} parent=0
    _
  %s10 = ssub.s32 1, %s8
  %s11 = scalar_select 0, %s10, %s8
  $region1: #{ffn_layer.1} parent=0
    #allocation3 [shape = 'u8[16384]{0}', space=vmem, size = 0x4000, scoped, tag = 'input window, operand 0']
    #allocation4 [shape = 's32[2]{0}', space=sflag, size = 0x8, scoped, tag = 'scoped memory for ffn_layer.1']
    #allocation5 [shape = 's32[2]{0}', space=sflag, size = 0x8, scoped, tag = 'scoped memory for ffn_layer.1']
    #allocation6 [shape = 'u8[131072]{0}', space=vmem, size = 0x20000, scoped, tag = 'input window, operand 1']
    #allocation7 [shape = 's32[2]{0}', space=sflag, size = 0x8, scoped, tag = 'scoped memory for ffn_layer.1']
    #allocation8 [shape = 'u8[131072]{0}', space=vmem, size = 0x20000, scoped, tag = 'input window, operand 3']
    #allocation9 [shape = 'u8[16384]{0}', space=vmem, size = 0x4000, scoped, tag = 'output window, operand 0']
    %12 = vsyncpa [#allocation4], 0
    %s13 = scalar_lea.sflag [#allocation4], 1
    %14 = vsyncpa %s13, 0
    %15 = vsyncpa [#allocation7], 0
    %s16 = scalar_lea.sflag [#allocation7], 1
    %17 = vsyncpa %s16, 0
    %18 = vsyncpa [#allocation5], 0
    %s19 = scalar_lea.sflag [#allocation5], 1
    %20 = vsyncpa %s19, 0
    loop: start=0, step=1, limit=10
    $region2: #{ffn_layer.1} parent=1 // loop_pre_header
      _
    $region3: #{ffn_layer.1} parent=1 // loop_header
      %s22 = sphi 0, %s26
      %p23 = scmp.ge.s32.totalorder %s22, 10
      %s29 = sphi 0, %s41
      %s30 = sphi 0, %s37
      %s31 = sphi 0, %s29
      %s32 = sphi 0, %s30
      %s33 = sphi 0, %s31
      %s34 = sphi 0, %s32
      %s44 = sphi 0, %s46
      %s47 = sphi 0, %s44
      %s48 = sphi 0, %s47
      %s64 = sphi 0, %s48
      %s70 = sphi 0, %s72
      %s73 = sphi 0, %s70
      %s74 = sphi 0, %s73
      %s90 = sphi 0, %s74
      %s96 = sphi 0, %s98
      %s99 = sphi 0, %s96
      %s100 = sphi 0, %s99
      %s116 = sphi 0, %s100
      %s122 = sphi 0, %s124
      %s125 = sphi 0, %s122
      %s126 = sphi 0, %s125
      %s142 = sphi 0, %s126
      %s146 = sphi 0, %s146
      %s148 = sphi 0, %s146
      %s149 = sphi 0, %s148
      %s163 = sphi 0, %s149
      %s167 = sphi 0, %s167
      %s169 = sphi 0, %s167
      %s170 = sphi 0, %s169
      %s184 = sphi 0, %s170
      %s188 = sphi 0, %s188
      %s190 = sphi 0, %s188
      %s191 = sphi 0, %s190
      %s205 = sphi 0, %s191
      %s211 = sphi 0, %s213
      %s214 = sphi 0, %s211
      %s215 = sphi 0, %s214
      %s231 = sphi 0, %s215
    $region4: #{ffn_layer.1} parent=1 // loop_header_branch
      %25 = sbr.rel (%p23) target = $region8
    $region5: #{ffn_layer.1} parent=1 // loop_body
      %s27 = ssub.s32 %s22, 1
      %s28 = ssub.s32 %s22, 2
      %s35 = sadd.s32 1, %s30
      %p36 = scmp.ge.s32.totalorder %s35, 2
      %s37 = scalar_select %p36, 0, %s35
      %s38 = sadd.s32 1, %s29
      %s39 = scalar_select %p36, %s38, %s29
      %p40 = scmp.ge.s32.totalorder %s39, 4
      %s41 = scalar_select %p40, 0, %s39
      %s42 = ssub.s32 %s29, %s41
      %p43 = scmp.eq.s32.totalorder %s42, 0
      %s45 = sadd.s32 %s44, 1
      %s46 = scalar_select %p43, %s44, %s45
      %p49 = pneg %p43
      %p50 = scmp.eq.s32.totalorder %s22, 7
      %p51 = por %p49, %p50
      %p52 = scmp.ne.s32.totalorder %s44, %s47
      %p53 = scmp.eq.s32.totalorder %s22, 0
      %p54 = por %p52, %p53
      %p55 = scmp.ne.s32.totalorder %s44, %s47
      %p56 = scmp.eq.s32.totalorder %s27, 7
      %p57 = por %p55, %p56
      %p58 = scmp.ne.s32.totalorder %s47, %s48
      %p59 = scmp.eq.s32.totalorder %s27, 0
      %p60 = por %p58, %p59
      %p61 = scmp.ne.s32.totalorder %s47, %s48
      %p62 = scmp.eq.s32.totalorder %s28, 7
      %p63 = por %p61, %p62
      %p65 = scmp.ne.s32.totalorder %s48, %s64
      %p66 = scmp.eq.s32.totalorder %s28, 0
      %p67 = por %p65, %p66
      %s68 = ssub.s32 %s30, %s37
      %p69 = scmp.eq.s32.totalorder %s68, 0
      %s71 = sadd.s32 %s70, 1
      %s72 = scalar_select %p69, %s70, %s71
      %p75 = pneg %p69
      %p76 = scmp.eq.s32.totalorder %s22, 7
      %p77 = por %p75, %p76
      %p78 = scmp.ne.s32.totalorder %s70, %s73
      %p79 = scmp.eq.s32.totalorder %s22, 0
      %p80 = por %p78, %p79
      %p81 = scmp.ne.s32.totalorder %s70, %s73
      %p82 = scmp.eq.s32.totalorder %s27, 7
      %p83 = por %p81, %p82
      %p84 = scmp.ne.s32.totalorder %s73, %s74
      %p85 = scmp.eq.s32.totalorder %s27, 0
      %p86 = por %p84, %p85
      %p87 = scmp.ne.s32.totalorder %s73, %s74
      %p88 = scmp.eq.s32.totalorder %s28, 7
      %p89 = por %p87, %p88
      %p91 = scmp.ne.s32.totalorder %s74, %s90
      %p92 = scmp.eq.s32.totalorder %s28, 0
      %p93 = por %p91, %p92
      %s94 = ssub.s32 %s30, %s37
      %p95 = scmp.eq.s32.totalorder %s94, 0
      %s97 = sadd.s32 %s96, 1
      %s98 = scalar_select %p95, %s96, %s97
      %p101 = pneg %p95
      %p102 = scmp.eq.s32.totalorder %s22, 7
      %p103 = por %p101, %p102
      %p104 = scmp.ne.s32.totalorder %s96, %s99
      %p105 = scmp.eq.s32.totalorder %s22, 0
      %p106 = por %p104, %p105
      %p107 = scmp.ne.s32.totalorder %s96, %s99
      %p108 = scmp.eq.s32.totalorder %s27, 7
      %p109 = por %p107, %p108
      %p110 = scmp.ne.s32.totalorder %s99, %s100
      %p111 = scmp.eq.s32.totalorder %s27, 0
      %p112 = por %p110, %p111
      %p113 = scmp.ne.s32.totalorder %s99, %s100
      %p114 = scmp.eq.s32.totalorder %s28, 7
      %p115 = por %p113, %p114
      %p117 = scmp.ne.s32.totalorder %s100, %s116
      %p118 = scmp.eq.s32.totalorder %s28, 0
      %p119 = por %p117, %p118
      %s120 = ssub.s32 %s30, %s37
      %p121 = scmp.eq.s32.totalorder %s120, 0
      %s123 = sadd.s32 %s122, 1
      %s124 = scalar_select %p121, %s122, %s123
      %p127 = pneg %p121
      %p128 = scmp.eq.s32.totalorder %s22, 7
      %p129 = por %p127, %p128
      %p130 = scmp.ne.s32.totalorder %s122, %s125
      %p131 = scmp.eq.s32.totalorder %s22, 0
      %p132 = por %p130, %p131
      %p133 = scmp.ne.s32.totalorder %s122, %s125
      %p134 = scmp.eq.s32.totalorder %s27, 7
      %p135 = por %p133, %p134
      %p136 = scmp.ne.s32.totalorder %s125, %s126
      %p137 = scmp.eq.s32.totalorder %s27, 0
      %p138 = por %p136, %p137
      %p139 = scmp.ne.s32.totalorder %s125, %s126
      %p140 = scmp.eq.s32.totalorder %s28, 7
      %p141 = por %p139, %p140
      %p143 = scmp.ne.s32.totalorder %s126, %s142
      %p144 = scmp.eq.s32.totalorder %s28, 0
      %p145 = por %p143, %p144
      %s147 = sadd.s32 %s146, 1
      %p150 = scmp.eq.s32.totalorder %s22, 7
      %p151 = scmp.ne.s32.totalorder %s146, %s148
      %p152 = scmp.eq.s32.totalorder %s22, 0
      %p153 = por %p151, %p152
      %p154 = scmp.ne.s32.totalorder %s146, %s148
      %p155 = scmp.eq.s32.totalorder %s27, 7
      %p156 = por %p154, %p155
      %p157 = scmp.ne.s32.totalorder %s148, %s149
      %p158 = scmp.eq.s32.totalorder %s27, 0
      %p159 = por %p157, %p158
      %p160 = scmp.ne.s32.totalorder %s148, %s149
      %p161 = scmp.eq.s32.totalorder %s28, 7
      %p162 = por %p160, %p161
      %p164 = scmp.ne.s32.totalorder %s149, %s163
      %p165 = scmp.eq.s32.totalorder %s28, 0
      %p166 = por %p164, %p165
      %s168 = sadd.s32 %s167, 1
      %p171 = scmp.eq.s32.totalorder %s22, 7
      %p172 = scmp.ne.s32.totalorder %s167, %s169
      %p173 = scmp.eq.s32.totalorder %s22, 0
      %p174 = por %p172, %p173
      %p175 = scmp.ne.s32.totalorder %s167, %s169
      %p176 = scmp.eq.s32.totalorder %s27, 7
      %p177 = por %p175, %p176
      %p178 = scmp.ne.s32.totalorder %s169, %s170
      %p179 = scmp.eq.s32.totalorder %s27, 0
      %p180 = por %p178, %p179
      %p181 = scmp.ne.s32.totalorder %s169, %s170
      %p182 = scmp.eq.s32.totalorder %s28, 7
      %p183 = por %p181, %p182
      %p185 = scmp.ne.s32.totalorder %s170, %s184
      %p186 = scmp.eq.s32.totalorder %s28, 0
      %p187 = por %p185, %p186
      %s189 = sadd.s32 %s188, 1
      %p192 = scmp.eq.s32.totalorder %s22, 7
      %p193 = scmp.ne.s32.totalorder %s188, %s190
      %p194 = scmp.eq.s32.totalorder %s22, 0
      %p195 = por %p193, %p194
      %p196 = scmp.ne.s32.totalorder %s188, %s190
      %p197 = scmp.eq.s32.totalorder %s27, 7
      %p198 = por %p196, %p197
      %p199 = scmp.ne.s32.totalorder %s190, %s191
      %p200 = scmp.eq.s32.totalorder %s27, 0
      %p201 = por %p199, %p200
      %p202 = scmp.ne.s32.totalorder %s190, %s191
      %p203 = scmp.eq.s32.totalorder %s28, 7
      %p204 = por %p202, %p203
      %p206 = scmp.ne.s32.totalorder %s191, %s205
      %p207 = scmp.eq.s32.totalorder %s28, 0
      %p208 = por %p206, %p207
      %s209 = ssub.s32 %s29, %s41
      %p210 = scmp.eq.s32.totalorder %s209, 0
      %s212 = sadd.s32 %s211, 1
      %s213 = scalar_select %p210, %s211, %s212
      %p216 = pneg %p210
      %p217 = scmp.eq.s32.totalorder %s22, 7
      %p218 = por %p216, %p217
      %p219 = scmp.ne.s32.totalorder %s211, %s214
      %p220 = scmp.eq.s32.totalorder %s22, 0
      %p221 = por %p219, %p220
      %p222 = scmp.ne.s32.totalorder %s211, %s214
      %p223 = scmp.eq.s32.totalorder %s27, 7
      %p224 = por %p222, %p223
      %p225 = scmp.ne.s32.totalorder %s214, %s215
      %p226 = scmp.eq.s32.totalorder %s27, 0
      %p227 = por %p225, %p226
      %p228 = scmp.ne.s32.totalorder %s214, %s215
      %p229 = scmp.eq.s32.totalorder %s28, 7
      %p230 = por %p228, %p229
      %p232 = scmp.ne.s32.totalorder %s215, %s231
      %p233 = scmp.eq.s32.totalorder %s28, 0
      %p234 = por %p232, %p233
      %p235 = scmp.le.s32.totalorder 1, %s22
      %p236 = scmp.lt.s32.totalorder %s22, 9
      %p237 = pnand %p235, %p236
      %p238 = pneg %p237
      // Predicated region
      $region9: #{ffn_layer.1} parent=5 // pred_check
        _
      $region10: #{ffn_layer.1} parent=5 // pred_check_branch
        %240 = sbr.rel (%p237) target = $region12
      $region11: #{ffn_layer.1} parent=5 // pred_region
        %s241 = ssub.s32 %s22, 1
        // Predicated region
        $region13: #{ffn_layer.1} parent=11 // pred_check
          %p242 = pneg %p159
        $region14: #{ffn_layer.1} parent=11 // pred_check_branch
          %244 = sbr.rel (%p242) target = $region16
        $region15: #{ffn_layer.1} parent=11 // pred_region
          _
        $region16: #{ffn_layer.1} parent=11 // pred_fallthru
          _
        // Predicated region
        $region17: #{ffn_layer.1} parent=11 // pred_check
          %p245 = pneg %p180
        $region18: #{ffn_layer.1} parent=11 // pred_check_branch
          %247 = sbr.rel (%p245) target = $region20
        $region19: #{ffn_layer.1} parent=11 // pred_region
          _
        $region20: #{ffn_layer.1} parent=11 // pred_fallthru
          _
        // Predicated region
        $region21: #{ffn_layer.1} parent=11 // pred_check
          %p248 = pneg %p201
        $region22: #{ffn_layer.1} parent=11 // pred_check_branch
          %250 = sbr.rel (%p248) target = $region24
        $region23: #{ffn_layer.1} parent=11 // pred_region
          _
        $region24: #{ffn_layer.1} parent=11 // pred_fallthru
          _
      $region12: #{ffn_layer.1} parent=5 // pred_fallthru
        _
      %p251 = scmp.lt.s32.totalorder %s22, 8
      // Predicated region
      $region25: #{ffn_layer.1} parent=5 // pred_check
        %p252 = pneg %p251
      $region26: #{ffn_layer.1} parent=5 // pred_check_branch
        %254 = sbr.rel (%p252) target = $region28
      $region27: #{ffn_layer.1} parent=5 // pred_region
        // Predicated region
        $region29: #{ffn_layer.1} parent=27 // pred_check
          %p255 = pneg %p54
        $region30: #{ffn_layer.1} parent=27 // pred_check_branch
          %257 = sbr.rel (%p255) target = $region32
        $region31: #{ffn_layer.1} parent=27 // pred_region
          %s258 = sand.u32 %s44, 1
          %s259 = scalar_lea.sflag [#allocation4], %s258
          %s260 = sand.u32 %s44, 1
          %s261 = smul.addr %s260, 16
          %s262 = scalar_lea.vmem [#allocation3], %s261
          %s263 = smul.u32 2, %s29
          %s265 = ssub.s32 256, 256
          %266 = vsyncadd %s259, %s265
          %s267 = smul.addr %s263, 128
          %s268 = scalar_lea.hbm %s0, %s267
          %s269 = sshll.u32 %s262, 4
          %s270 = int_to_ptr.vmem [resolvable:$true] %s269
          %275 = dma.hbm_to_vmem [thread:$0]  %s268, 256, %s270, %s259, 128, 128, 8
        $region32: #{ffn_layer.1} parent=27 // pred_fallthru
          _
        // Predicated region
        $region33: #{ffn_layer.1} parent=27 // pred_check
          %p276 = pneg %p80
        $region34: #{ffn_layer.1} parent=27 // pred_check_branch
          %278 = sbr.rel (%p276) target = $region36
        $region35: #{ffn_layer.1} parent=27 // pred_region
          %s279 = sand.u32 %s22, 1
          %s280 = scalar_lea.sflag [#allocation7], %s279
          %s281 = sand.u32 %s70, 1
          %s282 = smul.addr %s281, 128
          %s283 = scalar_lea.vmem [#allocation6], %s282
          %s285 = ssub.s32 2048, 2048
          %286 = vsyncadd %s280, %s285
          %s287 = smul.addr %s30, 128
          %s288 = scalar_lea.hbm %s1, %s287
          %s289 = sshll.u32 %s283, 4
          %s290 = int_to_ptr.vmem [resolvable:$true] %s289
          %295 = dma.hbm_to_vmem [thread:$0]  %s288, 2048, %s290, %s280, 256, 128, 8
        $region36: #{ffn_layer.1} parent=27 // pred_fallthru
          _
        // Predicated region
        $region37: #{ffn_layer.1} parent=27 // pred_check
          %p296 = pneg %p106
        $region38: #{ffn_layer.1} parent=27 // pred_check_branch
          %298 = sbr.rel (%p296) target = $region40
        $region39: #{ffn_layer.1} parent=27 // pred_region
          %p299 = scmp.lt.s32.totalorder %s30, 1
          %s300 = scalar_select %p299, %s30, 1
          %s301 = scalar_lea.vmem %s2, %s300
        $region40: #{ffn_layer.1} parent=27 // pred_fallthru
          _
        // Predicated region
        $region41: #{ffn_layer.1} parent=27 // pred_check
          %p302 = pneg %p132
        $region42: #{ffn_layer.1} parent=27 // pred_check_branch
          %304 = sbr.rel (%p302) target = $region44
        $region43: #{ffn_layer.1} parent=27 // pred_region
          %s305 = sand.u32 %s22, 1
          %s306 = scalar_lea.sflag [#allocation7], %s305
          %s307 = sand.u32 %s122, 1
          %s308 = smul.addr %s307, 128
          %s309 = scalar_lea.vmem [#allocation8], %s308
          %s310 = smul.u32 16, %s30
          %s312 = ssub.s32 2048, 2048
          %313 = vsyncadd %s306, %s312
          %s314 = smul.addr %s310, 128
          %s315 = scalar_lea.hbm %s3, %s314
          %s316 = sshll.u32 %s309, 4
          %s317 = int_to_ptr.vmem [resolvable:$true] %s316
          %322 = dma.hbm_to_vmem [thread:$0]  %s315, 2048, %s317, %s306, 128, 128, 8
        $region44: #{ffn_layer.1} parent=27 // pred_fallthru
          _
      $region28: #{ffn_layer.1} parent=5 // pred_fallthru
        _
      %p323 = scmp.le.s32.totalorder 1, %s22
      %p324 = scmp.lt.s32.totalorder %s22, 9
      %p325 = pnand %p323, %p324
      %p326 = pneg %p325
      // Predicated region
      $region45: #{ffn_layer.1} parent=5 // pred_check
        _
      $region46: #{ffn_layer.1} parent=5 // pred_check_branch
        %328 = sbr.rel (%p325) target = $region48
      $region47: #{ffn_layer.1} parent=5 // pred_region
        %s329 = ssub.s32 %s22, 1
        %s330 = sand.u32 %s47, 1
        %s331 = scalar_lea.sflag [#allocation4], %s330
        %s332 = sand.u32 %s47, 1
        %s333 = smul.addr %s332, 16
        %s334 = scalar_lea.vmem [#allocation3], %s333
        // Predicated region
        $region49: #{ffn_layer.1} parent=47 // pred_check
          %p335 = pneg %p60
        $region50: #{ffn_layer.1} parent=47 // pred_check_branch
          %337 = sbr.rel (%p335) target = $region52
        $region51: #{ffn_layer.1} parent=47 // pred_region
          %338 = dma.done %s331, 256
        $region52: #{ffn_layer.1} parent=47 // pred_fallthru
          _
        %s339 = sand.u32 %s27, 1
        %s340 = scalar_lea.sflag [#allocation7], %s339
        %s341 = sand.u32 %s73, 1
        %s342 = smul.addr %s341, 128
        %s343 = scalar_lea.vmem [#allocation6], %s342
        // Predicated region
        $region53: #{ffn_layer.1} parent=47 // pred_check
          %p344 = pneg %p86
        $region54: #{ffn_layer.1} parent=47 // pred_check_branch
          %346 = sbr.rel (%p344) target = $region56
        $region55: #{ffn_layer.1} parent=47 // pred_region
          %347 = dma.done %s340, 2048
        $region56: #{ffn_layer.1} parent=47 // pred_fallthru
          _
        %s348 = sand.u32 %s27, 1
        %s349 = scalar_lea.sflag [#allocation7], %s348
        %s350 = sand.u32 %s125, 1
        %s351 = smul.addr %s350, 128
        %s352 = scalar_lea.vmem [#allocation8], %s351
        // Predicated region
        $region57: #{ffn_layer.1} parent=47 // pred_check
          %p353 = pneg %p138
        $region58: #{ffn_layer.1} parent=47 // pred_check_branch
          %355 = sbr.rel (%p353) target = $region60
        $region59: #{ffn_layer.1} parent=47 // pred_region
          %356 = dma.done %s349, 2048
        $region60: #{ffn_layer.1} parent=47 // pred_fallthru
          _
        %s357 = sand.u32 %s47, 1
        %s358 = scalar_lea.sflag [#allocation4], %s357
        %s359 = sand.u32 %s47, 1
        %s360 = smul.addr %s359, 16
        %s361 = scalar_lea.vmem [#allocation3], %s360
        %p362 = pneg %p60
        %p363 = pneg %p57
        %s364 = sand.u32 %s27, 1
        %s365 = scalar_lea.sflag [#allocation7], %s364
        %s366 = sand.u32 %s73, 1
        %s367 = smul.addr %s366, 128
        %s368 = scalar_lea.vmem [#allocation6], %s367
        %p369 = pneg %p86
        %p370 = pneg %p83
        %p371 = scmp.lt.s32.totalorder %s32, 1
        %s372 = scalar_select %p371, %s32, 1
        %s373 = scalar_lea.vmem %s2, %s372
        %p374 = pneg %p112
        %p375 = pneg %p109
        %s376 = sand.u32 %s27, 1
        %s377 = scalar_lea.sflag [#allocation7], %s376
        %s378 = sand.u32 %s125, 1
        %s379 = smul.addr %s378, 128
        %s380 = scalar_lea.vmem [#allocation8], %s379
        %p381 = pneg %p138
        %p382 = pneg %p135
        %p383 = pneg %p159
        %p384 = pneg %p156
        %p385 = pneg %p180
        %p386 = pneg %p177
        %p387 = pneg %p201
        %p388 = pneg %p198
        %p389 = pneg %p227
        %p390 = pneg %p224
        %s391 = sand.u32 %s214, 1
        %s392 = scalar_lea.sflag [#allocation5], %s391
        %s393 = sand.u32 %s214, 1
        %s394 = smul.addr %s393, 16
        %s395 = scalar_lea.vmem [#allocation9], %s394
        %s396 = smul.u32 2, %s31
        %p397 = scmp.lt.s32.totalorder %s32, 1
        %s398 = scalar_select %p397, %s32, 1
        %s399 = scalar_lea.vmem %s2, %s398
        %s400 = smul.u32 16, %s32
        %s401 = smul.u32 2, %s31
        %p402 = scmp.eq.s32.totalorder %s32, 0
        // Predicated region
        $region61: #{ffn_layer.1} parent=47 // pred_check
          %p403 = pneg %p402
        $region62: #{ffn_layer.1} parent=47 // pred_check_branch
          %405 = sbr.rel (%p403) target = $region64
        $region63: #{ffn_layer.1} parent=47 // pred_region
          %406 = vst [vmem:[#allocation2] sm:$0xff] 0.0
          %407 = vst [vmem:[#allocation2 + $0x8] sm:$0xff] 0.0
        $region64: #{ffn_layer.1} parent=47 // pred_fallthru
          _
        %v408 = vld [vmem:[%s334] sm:$0xff]
        %v409 = vld [vmem:[%s334 + $0x8] sm:$0xff]
        %v410 = vld [vmem:[%s343] sm:$0xff]
        %v411 = vld [vmem:[%s343 + $0x8] sm:$0xff]
        %v412 = vld [vmem:[%s343 + $0x10] sm:$0xff]
        %v413 = vld [vmem:[%s343 + $0x18] sm:$0xff]
        %v414 = vld [vmem:[%s343 + $0x20] sm:$0xff]
        %v415 = vld [vmem:[%s343 + $0x28] sm:$0xff]
        %v416 = vld [vmem:[%s343 + $0x30] sm:$0xff]
        %v417 = vld [vmem:[%s343 + $0x38] sm:$0xff]
        %v418 = vld [vmem:[%s343 + $0x40] sm:$0xff]
        %v419 = vld [vmem:[%s343 + $0x48] sm:$0xff]
        %v420 = vld [vmem:[%s343 + $0x50] sm:$0xff]
        %v421 = vld [vmem:[%s343 + $0x58] sm:$0xff]
        %v422 = vld [vmem:[%s343 + $0x60] sm:$0xff]
        %v423 = vld [vmem:[%s343 + $0x68] sm:$0xff]
        %v424 = vld [vmem:[%s343 + $0x70] sm:$0xff]
        %v425 = vld [vmem:[%s343 + $0x78] sm:$0xff]
        %v426 = vld [vmem:[%s399] sm:$0x1]
        %v428 = vlaneseq
        %v429 = vshrl.u32 %v428, 7
        %v430 = vsub.s32 0, %v429
        %v431 = vrot.slane %v426, %v430
        %433 = vmatprep.subr.mxu0 0.0
        %434 = vmatpush1.msra.mxu0 %v425
        %435 = vmatprep.subr.mxu0 0.0
        %436 = vmatpush1.msra.mxu0 %v424
        %437 = vmatprep.subr.mxu0 0.0
        %438 = vmatpush1.msra.mxu0 %v423
        %439 = vmatprep.subr.mxu0 0.0
        %440 = vmatpush1.msra.mxu0 %v422
        %441 = vmatprep.subr.mxu0 0.0
        %442 = vmatpush1.msra.mxu0 %v421
        %443 = vmatprep.subr.mxu0 0.0
        %444 = vmatpush1.msra.mxu0 %v420
        %445 = vmatprep.subr.mxu0 0.0
        %446 = vmatpush1.msra.mxu0 %v419
        %447 = vmatprep.subr.mxu0 0.0
        %448 = vmatpush1.msra.mxu0 %v418
        %449 = vmatprep.subr.mxu0 0.0
        %450 = vmatpush1.msra.mxu0 %v417
        %451 = vmatprep.subr.mxu0 0.0
        %452 = vmatpush1.msra.mxu0 %v416
        %453 = vmatprep.subr.mxu0 0.0
        %454 = vmatpush1.msra.mxu0 %v415
        %455 = vmatprep.subr.mxu0 0.0
        %456 = vmatpush1.msra.mxu0 %v414
        %457 = vmatprep.subr.mxu0 0.0
        %458 = vmatpush1.msra.mxu0 %v413
        %459 = vmatprep.subr.mxu0 0.0
        %460 = vmatpush1.msra.mxu0 %v412
        %461 = vmatprep.subr.mxu0 0.0
        %462 = vmatpush1.msra.mxu0 %v411
        %463 = vmatprep.subr.mxu0 0.0
        %464 = vmatpush1.msra.mxu0 %v410
        %465 = vmatprep.subr.mxu0 0.0
        %466 = vmatpush2.msra.mxu0 0.0
        %467 = vmatprep.subr.mxu0 0.0
        %468 = vmatpush2.msra.mxu0 0.0
        %469 = vmatprep.subr.mxu0 0.0
        %470 = vmatpush2.msra.mxu0 0.0
        %471 = vmatprep.subr.mxu0 0.0
        %472 = vmatpush2.msra.mxu0 0.0
        %473 = vmatprep.subr.mxu0 0.0
        %474 = vmatpush2.msra.mxu0 0.0
        %475 = vmatprep.subr.mxu0 0.0
        %476 = vmatpush2.msra.mxu0 0.0
        %477 = vmatprep.subr.mxu0 0.0
        %478 = vmatpush2.msra.mxu0 0.0
        %479 = vmatprep.subr.mxu0 0.0
        %480 = vmatpush2.msra.mxu0 0.0
        %481 = vmatprep.subr.mxu0 0.0
        %482 = vmatpush2.msra.mxu0 0.0
        %483 = vmatprep.subr.mxu0 0.0
        %484 = vmatpush2.msra.mxu0 0.0
        %485 = vmatprep.subr.mxu0 0.0
        %486 = vmatpush2.msra.mxu0 0.0
        %487 = vmatprep.subr.mxu0 0.0
        %488 = vmatpush2.msra.mxu0 0.0
        %489 = vmatprep.subr.mxu0 0.0
        %490 = vmatpush2.msra.mxu0 0.0
        %491 = vmatprep.subr.mxu0 0.0
        %492 = vmatpush2.msra.mxu0 0.0
        %493 = vmatprep.subr.mxu0 0.0
        %494 = vmatpush2.msra.mxu0 0.0
        %495 = vmatprep.subr.mxu0 0.0
        %496 = vmatpush2.msra.mxu0 0.0
        %497 = vmatprep.mubr.f32.mxu0 0.0
        %498 = vmatmul.mubr.f32.gmra.mxu0 %v408
        %v499 = vpop.f32.mrf.mxu0
        %v500 = vadd.f32 %v431, %v499
        %v501 = vpop.f32.mrf.mxu0
        %502 = vmatprep.mubr.f32.mxu0 0.0
        %503 = vmatmul.mubr.f32.gmra.mxu0 %v409
        %v504 = vpop.f32.mrf.mxu0
        %v505 = vadd.f32 %v431, %v504
        %v506 = vpop.f32.mrf.mxu0
        %507 = vdwg.mxu0
        %v508 = vmax.f32 %v500, 0.0
        %v509 = vmax.f32 %v505, 0.0
        %v510 = vld [vmem:[#allocation2] sm:$0xff]
        %v511 = vld [vmem:[#allocation2 + $0x8] sm:$0xff]
        %v512 = vld [vmem:[%s352] sm:$0xff]
        %v513 = vld [vmem:[%s352 + $0x8] sm:$0xff]
        %v514 = vld [vmem:[%s352 + $0x10] sm:$0xff]
        %v515 = vld [vmem:[%s352 + $0x18] sm:$0xff]
        %v516 = vld [vmem:[%s352 + $0x20] sm:$0xff]
        %v517 = vld [vmem:[%s352 + $0x28] sm:$0xff]
        %v518 = vld [vmem:[%s352 + $0x30] sm:$0xff]
        %v519 = vld [vmem:[%s352 + $0x38] sm:$0xff]
        %v520 = vld [vmem:[%s352 + $0x40] sm:$0xff]
        %v521 = vld [vmem:[%s352 + $0x48] sm:$0xff]
        %v522 = vld [vmem:[%s352 + $0x50] sm:$0xff]
        %v523 = vld [vmem:[%s352 + $0x58] sm:$0xff]
        %v524 = vld [vmem:[%s352 + $0x60] sm:$0xff]
        %v525 = vld [vmem:[%s352 + $0x68] sm:$0xff]
        %v526 = vld [vmem:[%s352 + $0x70] sm:$0xff]
        %v527 = vld [vmem:[%s352 + $0x78] sm:$0xff]
        %528 = vmatprep.subr.mxu0 0.0
        %529 = vmatpush1.msra.mxu0 %v527
        %530 = vmatprep.subr.mxu0 0.0
        %531 = vmatpush1.msra.mxu0 %v526
        %532 = vmatprep.subr.mxu0 0.0
        %533 = vmatpush1.msra.mxu0 %v525
        %534 = vmatprep.subr.mxu0 0.0
        %535 = vmatpush1.msra.mxu0 %v524
        %536 = vmatprep.subr.mxu0 0.0
        %537 = vmatpush1.msra.mxu0 %v523
        %538 = vmatprep.subr.mxu0 0.0
        %539 = vmatpush1.msra.mxu0 %v522
        %540 = vmatprep.subr.mxu0 0.0
        %541 = vmatpush1.msra.mxu0 %v521
        %542 = vmatprep.subr.mxu0 0.0
        %543 = vmatpush1.msra.mxu0 %v520
        %544 = vmatprep.subr.mxu0 0.0
        %545 = vmatpush1.msra.mxu0 %v519
        %546 = vmatprep.subr.mxu0 0.0
        %547 = vmatpush1.msra.mxu0 %v518
        %548 = vmatprep.subr.mxu0 0.0
        %549 = vmatpush1.msra.mxu0 %v517
        %550 = vmatprep.subr.mxu0 0.0
        %551 = vmatpush1.msra.mxu0 %v516
        %552 = vmatprep.subr.mxu0 0.0
        %553 = vmatpush1.msra.mxu0 %v515
        %554 = vmatprep.subr.mxu0 0.0
        %555 = vmatpush1.msra.mxu0 %v514
        %556 = vmatprep.subr.mxu0 0.0
        %557 = vmatpush1.msra.mxu0 %v513
        %558 = vmatprep.subr.mxu0 0.0
        %559 = vmatpush1.msra.mxu0 %v512
        %560 = vmatprep.subr.mxu0 0.0
        %561 = vmatpush2.msra.mxu0 0.0
        %562 = vmatprep.subr.mxu0 0.0
        %563 = vmatpush2.msra.mxu0 0.0
        %564 = vmatprep.subr.mxu0 0.0
        %565 = vmatpush2.msra.mxu0 0.0
        %566 = vmatprep.subr.mxu0 0.0
        %567 = vmatpush2.msra.mxu0 0.0
        %568 = vmatprep.subr.mxu0 0.0
        %569 = vmatpush2.msra.mxu0 0.0
        %570 = vmatprep.subr.mxu0 0.0
        %571 = vmatpush2.msra.mxu0 0.0
        %572 = vmatprep.subr.mxu0 0.0
        %573 = vmatpush2.msra.mxu0 0.0
        %574 = vmatprep.subr.mxu0 0.0
        %575 = vmatpush2.msra.mxu0 0.0
        %576 = vmatprep.subr.mxu0 0.0
        %577 = vmatpush2.msra.mxu0 0.0
        %578 = vmatprep.subr.mxu0 0.0
        %579 = vmatpush2.msra.mxu0 0.0
        %580 = vmatprep.subr.mxu0 0.0
        %581 = vmatpush2.msra.mxu0 0.0
        %582 = vmatprep.subr.mxu0 0.0
        %583 = vmatpush2.msra.mxu0 0.0
        %584 = vmatprep.subr.mxu0 0.0
        %585 = vmatpush2.msra.mxu0 0.0
        %586 = vmatprep.subr.mxu0 0.0
        %587 = vmatpush2.msra.mxu0 0.0
        %588 = vmatprep.subr.mxu0 0.0
        %589 = vmatpush2.msra.mxu0 0.0
        %590 = vmatprep.subr.mxu0 0.0
        %591 = vmatpush2.msra.mxu0 0.0
        %592 = vmatprep.mubr.f32.mxu0 0.0
        %593 = vmatmul.mubr.f32.gmra.mxu0 %v508
        %v594 = vpop.f32.mrf.mxu0
        %v595 = vadd.f32 0.0, %v594
        %v596 = vpop.f32.mrf.mxu0
        %597 = vmatprep.mubr.f32.mxu0 0.0
        %598 = vmatmul.mubr.f32.gmra.mxu0 %v509
        %v599 = vpop.f32.mrf.mxu0
        %v600 = vadd.f32 0.0, %v599
        %v601 = vpop.f32.mrf.mxu0
        %602 = vdwg.mxu0
        %v603 = vadd.f32 %v510, %v595
        %v604 = vadd.f32 %v511, %v600
        %605 = vst [vmem:[#allocation2] sm:$0xff] %v603
        %606 = vst [vmem:[#allocation2 + $0x8] sm:$0xff] %v604
        %p607 = scmp.eq.s32.totalorder %s32, 1
        // Predicated region
        $region65: #{ffn_layer.1} parent=47 // pred_check
          %p608 = pneg %p607
        $region66: #{ffn_layer.1} parent=47 // pred_check_branch
          %610 = sbr.rel (%p608) target = $region68
        $region67: #{ffn_layer.1} parent=47 // pred_region
          %v611 = vld [vmem:[%s334] sm:$0xff]
          %v612 = vld [vmem:[%s334 + $0x8] sm:$0xff]
          %v613 = vld [vmem:[#allocation2] sm:$0xff]
          %v614 = vld [vmem:[#allocation2 + $0x8] sm:$0xff]
          %v615 = vadd.f32 %v611, %v613
          %v616 = vadd.f32 %v612, %v614
          %v617 = vld [vmem:[%s4] sm:$0x1]
          %v619 = vlaneseq
          %v620 = vshrl.u32 %v619, 7
          %v621 = vsub.s32 0, %v620
          %v622 = vrot.slane %v617, %v621
          %v624 = vadd.f32 %v615, %v622
          %v625 = vadd.f32 %v616, %v622
          %626 = vadd.xlane.f32.xlu0 %v624
          %v627 = vpop.xlane.xlu0 %626
          %628 = vadd.xlane.f32.xlu0 %v625
          %v629 = vpop.xlane.xlu0 %628
          %v630 = vmul.f32 %v624, %v624
          %v631 = vmul.f32 %v625, %v625
          %632 = vadd.xlane.f32.xlu0 %v630
          %v633 = vpop.xlane.xlu0 %632
          %634 = vadd.xlane.f32.xlu0 %v631
          %v635 = vpop.xlane.xlu0 %634
          %v636 = vmul.f32 %v627, 0.0078125
          %v637 = vmul.f32 %v629, 0.0078125
          %v638 = vmul.f32 %v633, 0.0078125
          %v639 = vmul.f32 %v635, 0.0078125
          %v640 = vmul.f32 %v636, %v636
          %v641 = vmul.f32 %v637, %v637
          %v642 = vsub.f32 %v638, %v640
          %v643 = vsub.f32 %v639, %v641
          %v644 = vmax.f32 %v642, 0.0
          %v645 = vmax.f32 %v643, 0.0
          %v646 = vsub.f32 %v624, %v636
          %v647 = vsub.f32 %v625, %v637
          %v648 = vadd.f32 %v644, 1e-05
          %v649 = vadd.f32 %v645, 1e-05
          %v650 = vrsqrt.pop %v648
          %v651 = vrsqrt.pop %v649
          %v652 = vmul.f32 %v646, %v650
          %v653 = vmul.f32 %v647, %v651
          %v654 = vld [vmem:[%s5] sm:$0x1]
          %v656 = vlaneseq
          %v657 = vshrl.u32 %v656, 7
          %v658 = vsub.s32 0, %v657
          %v659 = vrot.slane %v654, %v658
          %v661 = vmul.f32 %v652, %v659
          %v662 = vmul.f32 %v653, %v659
          %v663 = vld [vmem:[%s6] sm:$0x1]
          %v665 = vlaneseq
          %v666 = vshrl.u32 %v665, 7
          %v667 = vsub.s32 0, %v666
          %v668 = vrot.slane %v663, %v667
          %v670 = vadd.f32 %v661, %v668
          %v671 = vadd.f32 %v662, %v668
          %672 = vst [vmem:[%s395] sm:$0xff] %v670
          %673 = vst [vmem:[%s395 + $0x8] sm:$0xff] %v671
        $region68: #{ffn_layer.1} parent=47 // pred_fallthru
          _
        %s674 = sand.u32 %s214, 1
        %s675 = scalar_lea.sflag [#allocation5], %s674
        %s676 = sand.u32 %s214, 1
        %s677 = smul.addr %s676, 16
        %s678 = scalar_lea.vmem [#allocation9], %s677
        // Predicated region
        $region69: #{ffn_layer.1} parent=47 // pred_check
          %p679 = pneg %p224
        $region70: #{ffn_layer.1} parent=47 // pred_check_branch
          %681 = sbr.rel (%p679) target = $region72
        $region71: #{ffn_layer.1} parent=47 // pred_region
          %s682 = smul.u32 2, %s31
          %s684 = ssub.s32 256, 256
          %685 = vsyncadd %s675, %s684
          %s686 = smul.addr %s682, 128
          %s687 = scalar_lea.hbm %s7, %s686
          %s688 = sshll.u32 %s678, 4
          %s689 = int_to_ptr.vmem [resolvable:$true] %s688
          %694 = dma.vmem_to_hbm [thread:$0]  %s689, 256, %s687, %s675, 128, 128, 8
        $region72: #{ffn_layer.1} parent=47 // pred_fallthru
          _
      $region48: #{ffn_layer.1} parent=5 // pred_fallthru
        _
      %p695 = scmp.le.s32.totalorder 2, %s22
      // Predicated region
      $region73: #{ffn_layer.1} parent=5 // pred_check
        %p696 = pneg %p695
      $region74: #{ffn_layer.1} parent=5 // pred_check_branch
        %698 = sbr.rel (%p696) target = $region76
      $region75: #{ffn_layer.1} parent=5 // pred_region
        %s699 = ssub.s32 %s22, 2
        // Predicated region
        $region77: #{ffn_layer.1} parent=75 // pred_check
          %p700 = pneg %p230
        $region78: #{ffn_layer.1} parent=75 // pred_check_branch
          %702 = sbr.rel (%p700) target = $region80
        $region79: #{ffn_layer.1} parent=75 // pred_region
          %s703 = sand.u32 %s215, 1
          %s704 = scalar_lea.sflag [#allocation5], %s703
          %s705 = sand.u32 %s215, 1
          %s706 = smul.addr %s705, 16
          %s707 = scalar_lea.vmem [#allocation9], %s706
          %708 = dma.done %s704, 256
        $region80: #{ffn_layer.1} parent=75 // pred_fallthru
          _
      $region76: #{ffn_layer.1} parent=5 // pred_fallthru
        _
    $region6: #{ffn_layer.1} parent=1 // loop_footer
      %s26 = sadd.s32 1, %s22
    $region7: #{ffn_layer.1} parent=1 // loop_footer_branch
      %21 = sbr.rel target = $region3
    $region8: #{ffn_layer.1} parent=1 // loop_exit
      _
    %709 = vsyncpa [#allocation4], 1
    %s710 = scalar_lea.sflag [#allocation4], 1
    %711 = vsyncpa %s710, 1
    %712 = vsyncpa [#allocation7], 1
    %s713 = scalar_lea.sflag [#allocation7], 1
    %714 = vsyncpa %s713, 1
    %715 = vsyncpa [#allocation5], 1
    %s716 = scalar_lea.sflag [#allocation5], 1
    %717 = vsyncpa %s716, 1

</llo_original>
